<compile_context>
chip_gen: v5e
topology: v5e:2x2
jax: 0.10.0
libtpu: 0.0.40
codegen_flags: <defaults>
</compile_context>

<pallas_src>
import math

import jax
import jax.numpy as jnp
from jax import lax
from jax.experimental import pallas as pl
from jax.experimental.pallas import tpu as pltpu


def _make_kernel(NB, H, W2, C_out):
    """One fused step: 3x3 conv (Cin=1) + bias + MaxPool(2x2, stride (1, 2))."""
    CW = C_out * W2
    H_out = H - 1

    def kernel(a_ref, w_ref, b_ref, o_ref):
        # a_ref: (4, NB, H+2, CW) channel-replicated, zero-padded activations.
        #   Variant axis (per pooled-width index m):
        #     0: padded col 2m      1: padded col 2m+1
        #     2: padded col 2m+2    3: padded col 2m+3
        # w_ref: (9, H, CW)  tap row dy*3+dx, lane c*W2+m = w[c,dy,dx],
        #                    pre-broadcast across all H sublanes.
        # b_ref: (H, CW)     lane c*W2+m = b[c], pre-broadcast across sublanes.
        # o_ref: (NB, H_out, CW)

        # Hoisted, already sublane-dense weight/bias tiles: no per-tap
        # broadcast_in_dim anywhere below.
        w_rows = [w_ref[t] for t in range(9)]          # 9 x (H, CW)
        bias = b_ref[...]                               # (H, CW)

        for n in range(NB):                             # static unroll, tiny batch
            # Per-image padded activation variants, (H+2, CW) each.
            e0 = a_ref[0, n]
            o0 = a_ref[1, n]
            e1 = a_ref[2, n]
            o1 = a_ref[3, n]

            conv_e = bias                               # conv at even output cols 2m
            conv_o = bias                               # conv at odd  output cols 2m+1

            # 3x3 conv as 9 unrolled lane-dense MAC taps on the VPU.
            for dy in range(3):
                w0 = w_rows[3 * dy + 0]
                w1 = w_rows[3 * dy + 1]
                w2 = w_rows[3 * dy + 2]
                re0 = e0[dy:dy + H, :]
                ro0 = o0[dy:dy + H, :]
                re1 = e1[dy:dy + H, :]
                ro1 = o1[dy:dy + H, :]
                conv_e = conv_e + w0 * re0 + w1 * ro0 + w2 * re1
                conv_o = conv_o + w0 * ro0 + w1 * re1 + w2 * ro1

            # MaxPool2d(kernel=2, stride=(1, 2)):
            #   width (stride 2): max(even col, odd col) of the same window;
            #   height (stride 1): max of consecutive rows via a sublane
            #   rotation (XLU) instead of a +1-offset slice (relayout copy).
            col_max = jnp.maximum(conv_e, conv_o)                 # (H, CW)
            nxt = pltpu.roll(col_max, shift=H - 1, axis=0)        # row i <- row i+1 (mod H)
            pooled = jnp.maximum(col_max, nxt)[0:H_out, :]        # (H_out, CW)
            o_ref[n] = pooled.astype(o_ref.dtype)

    return kernel


def prepare_params(w, b, H, W):
    """One-time parameter prep (call once; NOT in the per-step hot path).

    Returns lane- and sublane-dense slabs:
      w_slab: (9, H, C_out*W//2) with [dy*3+dx, h, c*W2+m] = w[c, 0, dy, dx]
      b_slab: (H, C_out*W//2)    with [h, c*W2+m]          = b[c]
    """
    C_out = w.shape[0]
    W2 = W // 2
    CW = C_out * W2
    w_rows = jnp.repeat(w.reshape(C_out, 9).T, W2, axis=1)        # (9, CW)
    w_slab = jnp.broadcast_to(w_rows[:, None, :], (9, H, CW))     # (9, H, CW)
    b_slab = jnp.broadcast_to(jnp.repeat(b, W2)[None, :], (H, CW))
    return w_slab, b_slab


def cnn_with_pooling(x, w_slab, b_slab):
    """x: (N, 1, H, W) f32; w_slab/b_slab from prepare_params. Returns NCHW."""
    N, Cin, H, W = x.shape
    assert Cin == 1 and W % 2 == 0 and H >= 2
    W2 = W // 2
    CW = w_slab.shape[-1]
    C_out = CW // W2
    H_out = H - 1            # pool kernel 2, stride 1 along H
    W_out = W2               # pool kernel 2, stride 2 along W
    # Full lane density (unmasked vst) assumes CW is a multiple of 128
    # (true for C_out=16, W=16); other shapes stay correct but store masked.

    # Kernel-ready activation slab, one straight op chain so XLA fuses it into
    # a single input fusion: zero-pad, even/odd column split (stride-2 width
    # pooling becomes a plain elementwise max in-kernel), xC_out lane tile.
    xp = jnp.pad(x[:, 0], ((0, 0), (1, 1), (1, 1)))                        # (N, H+2, W+2)
    variants = jnp.stack([xp[:, :, v:v + W:2] for v in range(4)], axis=0)  # (4, N, H+2, W2)
    acts = jnp.tile(variants, (1, 1, 1, C_out))                            # (4, N, H+2, CW)

    kernel = _make_kernel(N, H, W2, C_out)

    out_cw = pl.pallas_call(
        kernel,
        out_shape=jax.ShapeDtypeStruct((N, H_out, CW), x.dtype),
        grid_spec=pltpu.PrefetchScalarGridSpec(
            num_scalar_prefetch=0,
            # Whole batch in one step: ~150 KFLOP of work vs ~0.35 us/step
            # pipeline overhead.  On v7x, promote the batch to a leading
            # "parallel" grid axis (2 TensorCores) only once N or H*W grows
            # enough to amortize the per-step overhead.
            grid=(1,),
            in_specs=[
                pl.BlockSpec((4, N, H + 2, CW), lambda g: (0, 0, 0, 0)),
                pl.BlockSpec((9, H, CW), lambda g: (0, 0, 0)),
                pl.BlockSpec((H, CW), lambda g: (0, 0)),
            ],
            out_specs=pl.BlockSpec((N, H_out, CW), lambda g: (0, 0, 0)),
        ),
        compiler_params=pltpu.CompilerParams(
            dimension_semantics=("arbitrary",)),
    )(acts, w_slab, b_slab)

    # Lane index is c*W_out + m.  Consumers that can take this packed layout
    # should skip the line below; for the PyTorch-equivalent NCHW result it is
    # one small reshape + transpose.
    return jnp.transpose(out_cw.reshape(N, H_out, C_out, W_out), (0, 2, 1, 3))


def reference(x, w, b):
    conv = lax.conv_general_dilated(
        x, w, window_strides=(1, 1), padding=((1, 1), (1, 1)),
        dimension_numbers=("NCHW", "OIHW", "NCHW"))
    conv = conv + b[None, :, None, None]
    return lax.reduce_window(conv, -jnp.inf, lax.max,
                             window_dimensions=(1, 1, 2, 2),
                             window_strides=(1, 1, 1, 2),
                             padding="VALID")


if __name__ == "__main__":
    key = jax.random.PRNGKey(0)
    kx, kw, kb = jax.random.split(key, 3)

    N, C_in, H, W = 2, 1, 16, 16
    C_out = 16
    x = jax.random.normal(kx, (N, C_in, H, W), jnp.float32)

    # Deterministic Conv2d-style init (uniform in +-1/sqrt(fan_in)).
    fan_in = C_in * 3 * 3
    bound = 1.0 / math.sqrt(fan_in)
    w = jax.random.uniform(kw, (C_out, C_in, 3, 3), jnp.float32, -bound, bound)
    b = jax.random.uniform(kb, (C_out,), jnp.float32, -bound, bound)

    # One-time parameter prep (outside the per-call hot path).
    w_slab, b_slab = prepare_params(w, b, H, W)

    fwd = jax.jit(cnn_with_pooling)
    out = jax.block_until_ready(fwd(x, w_slab, b_slab))

    ref = reference(x, w, b)
    assert out.shape == (N, C_out, H - 1, W // 2), out.shape
    assert bool(jnp.allclose(out, ref, atol=1e-5, rtol=1e-5)), \
        float(jnp.max(jnp.abs(out - ref)))
    print("KERNEL_OK")
</pallas_src>

<mosaic_0001>
module attributes {stable_mosaic.version = 11 : i64} {
  func.func @kernel(%arg0: i32, %arg1: memref<4x2x18x128xf32, #tpu.memory_space<vmem>>, %arg2: memref<9x16x128xf32, #tpu.memory_space<vmem>>, %arg3: memref<16x128xf32, #tpu.memory_space<vmem>>, %arg4: memref<2x15x128xf32, #tpu.memory_space<vmem>>) attributes {dimension_semantics = [#tpu.dimension_semantics<arbitrary>], iteration_bounds = array<i64: 1>, scalar_prefetch = 0 : i64, scratch_operands = 0 : i64, tpu.core_type = #tpu.core_type<tc>, window_params = [{pipeline_mode = #tpu.pipeline_mode<synchronous>, transform_indices = @transform_0, window_bounds = array<i64: 4, 2, 18, 128>}, {pipeline_mode = #tpu.pipeline_mode<synchronous>, transform_indices = @transform_1, window_bounds = array<i64: 9, 16, 128>}, {pipeline_mode = #tpu.pipeline_mode<synchronous>, transform_indices = @transform_2, window_bounds = array<i64: 16, 128>}, {pipeline_mode = #tpu.pipeline_mode<synchronous>, transform_indices = @transform_3, window_bounds = array<i64: 2, 15, 128>}]} {
    %c0 = arith.constant 0 : index
    %c0_0 = arith.constant 0 : index
    %c0_1 = arith.constant 0 : index
    %0 = vector.load %arg2[%c0, %c0_0, %c0_1] : memref<9x16x128xf32, #tpu.memory_space<vmem>>, vector<1x16x128xf32>
    %1 = vector.shape_cast %0 : vector<1x16x128xf32> to vector<16x128xf32>
    %c1 = arith.constant 1 : index
    %c0_2 = arith.constant 0 : index
    %c0_3 = arith.constant 0 : index
    %2 = vector.load %arg2[%c1, %c0_2, %c0_3] : memref<9x16x128xf32, #tpu.memory_space<vmem>>, vector<1x16x128xf32>
    %3 = vector.shape_cast %2 : vector<1x16x128xf32> to vector<16x128xf32>
    %c2 = arith.constant 2 : index
    %c0_4 = arith.constant 0 : index
    %c0_5 = arith.constant 0 : index
    %4 = vector.load %arg2[%c2, %c0_4, %c0_5] : memref<9x16x128xf32, #tpu.memory_space<vmem>>, vector<1x16x128xf32>
    %5 = vector.shape_cast %4 : vector<1x16x128xf32> to vector<16x128xf32>
    %c3 = arith.constant 3 : index
    %c0_6 = arith.constant 0 : index
    %c0_7 = arith.constant 0 : index
    %6 = vector.load %arg2[%c3, %c0_6, %c0_7] : memref<9x16x128xf32, #tpu.memory_space<vmem>>, vector<1x16x128xf32>
    %7 = vector.shape_cast %6 : vector<1x16x128xf32> to vector<16x128xf32>
    %c4 = arith.constant 4 : index
    %c0_8 = arith.constant 0 : index
    %c0_9 = arith.constant 0 : index
    %8 = vector.load %arg2[%c4, %c0_8, %c0_9] : memref<9x16x128xf32, #tpu.memory_space<vmem>>, vector<1x16x128xf32>
    %9 = vector.shape_cast %8 : vector<1x16x128xf32> to vector<16x128xf32>
    %c5 = arith.constant 5 : index
    %c0_10 = arith.constant 0 : index
    %c0_11 = arith.constant 0 : index
    %10 = vector.load %arg2[%c5, %c0_10, %c0_11] : memref<9x16x128xf32, #tpu.memory_space<vmem>>, vector<1x16x128xf32>
    %11 = vector.shape_cast %10 : vector<1x16x128xf32> to vector<16x128xf32>
    %c6 = arith.constant 6 : index
    %c0_12 = arith.constant 0 : index
    %c0_13 = arith.constant 0 : index
    %12 = vector.load %arg2[%c6, %c0_12, %c0_13] : memref<9x16x128xf32, #tpu.memory_space<vmem>>, vector<1x16x128xf32>
    %13 = vector.shape_cast %12 : vector<1x16x128xf32> to vector<16x128xf32>
    %c7 = arith.constant 7 : index
    %c0_14 = arith.constant 0 : index
    %c0_15 = arith.constant 0 : index
    %14 = vector.load %arg2[%c7, %c0_14, %c0_15] : memref<9x16x128xf32, #tpu.memory_space<vmem>>, vector<1x16x128xf32>
    %15 = vector.shape_cast %14 : vector<1x16x128xf32> to vector<16x128xf32>
    %c8 = arith.constant 8 : index
    %c0_16 = arith.constant 0 : index
    %c0_17 = arith.constant 0 : index
    %16 = vector.load %arg2[%c8, %c0_16, %c0_17] : memref<9x16x128xf32, #tpu.memory_space<vmem>>, vector<1x16x128xf32>
    %17 = vector.shape_cast %16 : vector<1x16x128xf32> to vector<16x128xf32>
    %c0_18 = arith.constant 0 : index
    %c0_19 = arith.constant 0 : index
    %18 = vector.load %arg3[%c0_18, %c0_19] : memref<16x128xf32, #tpu.memory_space<vmem>>, vector<16x128xf32>
    %c0_20 = arith.constant 0 : index
    %c0_21 = arith.constant 0 : index
    %c0_22 = arith.constant 0 : index
    %c0_23 = arith.constant 0 : index
    %19 = vector.load %arg1[%c0_20, %c0_21, %c0_22, %c0_23] : memref<4x2x18x128xf32, #tpu.memory_space<vmem>>, vector<1x1x18x128xf32>
    %20 = vector.shape_cast %19 : vector<1x1x18x128xf32> to vector<18x128xf32>
    %c1_24 = arith.constant 1 : index
    %c0_25 = arith.constant 0 : index
    %c0_26 = arith.constant 0 : index
    %c0_27 = arith.constant 0 : index
    %21 = vector.load %arg1[%c1_24, %c0_25, %c0_26, %c0_27] : memref<4x2x18x128xf32, #tpu.memory_space<vmem>>, vector<1x1x18x128xf32>
    %22 = vector.shape_cast %21 : vector<1x1x18x128xf32> to vector<18x128xf32>
    %c2_28 = arith.constant 2 : index
    %c0_29 = arith.constant 0 : index
    %c0_30 = arith.constant 0 : index
    %c0_31 = arith.constant 0 : index
    %23 = vector.load %arg1[%c2_28, %c0_29, %c0_30, %c0_31] : memref<4x2x18x128xf32, #tpu.memory_space<vmem>>, vector<1x1x18x128xf32>
    %24 = vector.shape_cast %23 : vector<1x1x18x128xf32> to vector<18x128xf32>
    %c3_32 = arith.constant 3 : index
    %c0_33 = arith.constant 0 : index
    %c0_34 = arith.constant 0 : index
    %c0_35 = arith.constant 0 : index
    %25 = vector.load %arg1[%c3_32, %c0_33, %c0_34, %c0_35] : memref<4x2x18x128xf32, #tpu.memory_space<vmem>>, vector<1x1x18x128xf32>
    %26 = vector.shape_cast %25 : vector<1x1x18x128xf32> to vector<18x128xf32>
    %27 = vector.extract_strided_slice %20 {offsets = [0, 0], sizes = [16, 128], strides = [1, 1]} : vector<18x128xf32> to vector<16x128xf32>
    %28 = vector.extract_strided_slice %22 {offsets = [0, 0], sizes = [16, 128], strides = [1, 1]} : vector<18x128xf32> to vector<16x128xf32>
    %29 = vector.extract_strided_slice %24 {offsets = [0, 0], sizes = [16, 128], strides = [1, 1]} : vector<18x128xf32> to vector<16x128xf32>
    %30 = vector.extract_strided_slice %26 {offsets = [0, 0], sizes = [16, 128], strides = [1, 1]} : vector<18x128xf32> to vector<16x128xf32>
    %31 = arith.mulf %1, %27 : vector<16x128xf32>
    %32 = arith.addf %18, %31 : vector<16x128xf32>
    %33 = arith.mulf %3, %28 : vector<16x128xf32>
    %34 = arith.addf %32, %33 : vector<16x128xf32>
    %35 = arith.mulf %5, %29 : vector<16x128xf32>
    %36 = arith.addf %34, %35 : vector<16x128xf32>
    %37 = arith.mulf %1, %28 : vector<16x128xf32>
    %38 = arith.addf %18, %37 : vector<16x128xf32>
    %39 = arith.mulf %3, %29 : vector<16x128xf32>
    %40 = arith.addf %38, %39 : vector<16x128xf32>
    %41 = arith.mulf %5, %30 : vector<16x128xf32>
    %42 = arith.addf %40, %41 : vector<16x128xf32>
    %43 = vector.extract_strided_slice %20 {offsets = [1, 0], sizes = [16, 128], strides = [1, 1]} : vector<18x128xf32> to vector<16x128xf32>
    %44 = vector.extract_strided_slice %22 {offsets = [1, 0], sizes = [16, 128], strides = [1, 1]} : vector<18x128xf32> to vector<16x128xf32>
    %45 = vector.extract_strided_slice %24 {offsets = [1, 0], sizes = [16, 128], strides = [1, 1]} : vector<18x128xf32> to vector<16x128xf32>
    %46 = vector.extract_strided_slice %26 {offsets = [1, 0], sizes = [16, 128], strides = [1, 1]} : vector<18x128xf32> to vector<16x128xf32>
    %47 = arith.mulf %7, %43 : vector<16x128xf32>
    %48 = arith.addf %36, %47 : vector<16x128xf32>
    %49 = arith.mulf %9, %44 : vector<16x128xf32>
    %50 = arith.addf %48, %49 : vector<16x128xf32>
    %51 = arith.mulf %11, %45 : vector<16x128xf32>
    %52 = arith.addf %50, %51 : vector<16x128xf32>
    %53 = arith.mulf %7, %44 : vector<16x128xf32>
    %54 = arith.addf %42, %53 : vector<16x128xf32>
    %55 = arith.mulf %9, %45 : vector<16x128xf32>
    %56 = arith.addf %54, %55 : vector<16x128xf32>
    %57 = arith.mulf %11, %46 : vector<16x128xf32>
    %58 = arith.addf %56, %57 : vector<16x128xf32>
    %59 = vector.extract_strided_slice %20 {offsets = [2, 0], sizes = [16, 128], strides = [1, 1]} : vector<18x128xf32> to vector<16x128xf32>
    %60 = vector.extract_strided_slice %22 {offsets = [2, 0], sizes = [16, 128], strides = [1, 1]} : vector<18x128xf32> to vector<16x128xf32>
    %61 = vector.extract_strided_slice %24 {offsets = [2, 0], sizes = [16, 128], strides = [1, 1]} : vector<18x128xf32> to vector<16x128xf32>
    %62 = vector.extract_strided_slice %26 {offsets = [2, 0], sizes = [16, 128], strides = [1, 1]} : vector<18x128xf32> to vector<16x128xf32>
    %63 = arith.mulf %13, %59 : vector<16x128xf32>
    %64 = arith.addf %52, %63 : vector<16x128xf32>
    %65 = arith.mulf %15, %60 : vector<16x128xf32>
    %66 = arith.addf %64, %65 : vector<16x128xf32>
    %67 = arith.mulf %17, %61 : vector<16x128xf32>
    %68 = arith.addf %66, %67 : vector<16x128xf32>
    %69 = arith.mulf %13, %60 : vector<16x128xf32>
    %70 = arith.addf %58, %69 : vector<16x128xf32>
    %71 = arith.mulf %15, %61 : vector<16x128xf32>
    %72 = arith.addf %70, %71 : vector<16x128xf32>
    %73 = arith.mulf %17, %62 : vector<16x128xf32>
    %74 = arith.addf %72, %73 : vector<16x128xf32>
    %75 = arith.maximumf %68, %74 : vector<16x128xf32>
    %c15_i32 = arith.constant 15 : i32
    %76 = tpu.dynamic_rotate %75 by %c15_i32 dim 0 : vector<16x128xf32>, i32 -> vector<16x128xf32>
    %77 = arith.maximumf %75, %76 : vector<16x128xf32>
    %78 = vector.extract_strided_slice %77 {offsets = [0, 0], sizes = [15, 128], strides = [1, 1]} : vector<16x128xf32> to vector<15x128xf32>
    %c0_36 = arith.constant 0 : index
    %c0_37 = arith.constant 0 : index
    %c0_38 = arith.constant 0 : index
    %79 = vector.load %arg4[%c0_36, %c0_37, %c0_38] : memref<2x15x128xf32, #tpu.memory_space<vmem>>, vector<1x15x128xf32>
    %80 = vector.shape_cast %79 : vector<1x15x128xf32> to vector<15x128xf32>
    %81 = vector.shape_cast %78 : vector<15x128xf32> to vector<1x15x128xf32>
    tpu.vector_store %arg4[%c0_36, %c0_37, %c0_38], %81 {strides = array<i32>} : memref<2x15x128xf32, #tpu.memory_space<vmem>>, vector<1x15x128xf32>,
    %c0_39 = arith.constant 0 : index
    %c1_40 = arith.constant 1 : index
    %c0_41 = arith.constant 0 : index
    %c0_42 = arith.constant 0 : index
    %82 = vector.load %arg1[%c0_39, %c1_40, %c0_41, %c0_42] : memref<4x2x18x128xf32, #tpu.memory_space<vmem>>, vector<1x1x18x128xf32>
    %83 = vector.shape_cast %82 : vector<1x1x18x128xf32> to vector<18x128xf32>
    %c1_43 = arith.constant 1 : index
    %c1_44 = arith.constant 1 : index
    %c0_45 = arith.constant 0 : index
    %c0_46 = arith.constant 0 : index
    %84 = vector.load %arg1[%c1_43, %c1_44, %c0_45, %c0_46] : memref<4x2x18x128xf32, #tpu.memory_space<vmem>>, vector<1x1x18x128xf32>
    %85 = vector.shape_cast %84 : vector<1x1x18x128xf32> to vector<18x128xf32>
    %c2_47 = arith.constant 2 : index
    %c1_48 = arith.constant 1 : index
    %c0_49 = arith.constant 0 : index
    %c0_50 = arith.constant 0 : index
    %86 = vector.load %arg1[%c2_47, %c1_48, %c0_49, %c0_50] : memref<4x2x18x128xf32, #tpu.memory_space<vmem>>, vector<1x1x18x128xf32>
    %87 = vector.shape_cast %86 : vector<1x1x18x128xf32> to vector<18x128xf32>
    %c3_51 = arith.constant 3 : index
    %c1_52 = arith.constant 1 : index
    %c0_53 = arith.constant 0 : index
    %c0_54 = arith.constant 0 : index
    %88 = vector.load %arg1[%c3_51, %c1_52, %c0_53, %c0_54] : memref<4x2x18x128xf32, #tpu.memory_space<vmem>>, vector<1x1x18x128xf32>
    %89 = vector.shape_cast %88 : vector<1x1x18x128xf32> to vector<18x128xf32>
    %90 = vector.extract_strided_slice %83 {offsets = [0, 0], sizes = [16, 128], strides = [1, 1]} : vector<18x128xf32> to vector<16x128xf32>
    %91 = vector.extract_strided_slice %85 {offsets = [0, 0], sizes = [16, 128], strides = [1, 1]} : vector<18x128xf32> to vector<16x128xf32>
    %92 = vector.extract_strided_slice %87 {offsets = [0, 0], sizes = [16, 128], strides = [1, 1]} : vector<18x128xf32> to vector<16x128xf32>
    %93 = vector.extract_strided_slice %89 {offsets = [0, 0], sizes = [16, 128], strides = [1, 1]} : vector<18x128xf32> to vector<16x128xf32>
    %94 = arith.mulf %1, %90 : vector<16x128xf32>
    %95 = arith.addf %18, %94 : vector<16x128xf32>
    %96 = arith.mulf %3, %91 : vector<16x128xf32>
    %97 = arith.addf %95, %96 : vector<16x128xf32>
    %98 = arith.mulf %5, %92 : vector<16x128xf32>
    %99 = arith.addf %97, %98 : vector<16x128xf32>
    %100 = arith.mulf %1, %91 : vector<16x128xf32>
    %101 = arith.addf %18, %100 : vector<16x128xf32>
    %102 = arith.mulf %3, %92 : vector<16x128xf32>
    %103 = arith.addf %101, %102 : vector<16x128xf32>
    %104 = arith.mulf %5, %93 : vector<16x128xf32>
    %105 = arith.addf %103, %104 : vector<16x128xf32>
    %106 = vector.extract_strided_slice %83 {offsets = [1, 0], sizes = [16, 128], strides = [1, 1]} : vector<18x128xf32> to vector<16x128xf32>
    %107 = vector.extract_strided_slice %85 {offsets = [1, 0], sizes = [16, 128], strides = [1, 1]} : vector<18x128xf32> to vector<16x128xf32>
    %108 = vector.extract_strided_slice %87 {offsets = [1, 0], sizes = [16, 128], strides = [1, 1]} : vector<18x128xf32> to vector<16x128xf32>
    %109 = vector.extract_strided_slice %89 {offsets = [1, 0], sizes = [16, 128], strides = [1, 1]} : vector<18x128xf32> to vector<16x128xf32>
    %110 = arith.mulf %7, %106 : vector<16x128xf32>
    %111 = arith.addf %99, %110 : vector<16x128xf32>
    %112 = arith.mulf %9, %107 : vector<16x128xf32>
    %113 = arith.addf %111, %112 : vector<16x128xf32>
    %114 = arith.mulf %11, %108 : vector<16x128xf32>
    %115 = arith.addf %113, %114 : vector<16x128xf32>
    %116 = arith.mulf %7, %107 : vector<16x128xf32>
    %117 = arith.addf %105, %116 : vector<16x128xf32>
    %118 = arith.mulf %9, %108 : vector<16x128xf32>
    %119 = arith.addf %117, %118 : vector<16x128xf32>
    %120 = arith.mulf %11, %109 : vector<16x128xf32>
    %121 = arith.addf %119, %120 : vector<16x128xf32>
    %122 = vector.extract_strided_slice %83 {offsets = [2, 0], sizes = [16, 128], strides = [1, 1]} : vector<18x128xf32> to vector<16x128xf32>
    %123 = vector.extract_strided_slice %85 {offsets = [2, 0], sizes = [16, 128], strides = [1, 1]} : vector<18x128xf32> to vector<16x128xf32>
    %124 = vector.extract_strided_slice %87 {offsets = [2, 0], sizes = [16, 128], strides = [1, 1]} : vector<18x128xf32> to vector<16x128xf32>
    %125 = vector.extract_strided_slice %89 {offsets = [2, 0], sizes = [16, 128], strides = [1, 1]} : vector<18x128xf32> to vector<16x128xf32>
    %126 = arith.mulf %13, %122 : vector<16x128xf32>
    %127 = arith.addf %115, %126 : vector<16x128xf32>
    %128 = arith.mulf %15, %123 : vector<16x128xf32>
    %129 = arith.addf %127, %128 : vector<16x128xf32>
    %130 = arith.mulf %17, %124 : vector<16x128xf32>
    %131 = arith.addf %129, %130 : vector<16x128xf32>
    %132 = arith.mulf %13, %123 : vector<16x128xf32>
    %133 = arith.addf %121, %132 : vector<16x128xf32>
    %134 = arith.mulf %15, %124 : vector<16x128xf32>
    %135 = arith.addf %133, %134 : vector<16x128xf32>
    %136 = arith.mulf %17, %125 : vector<16x128xf32>
    %137 = arith.addf %135, %136 : vector<16x128xf32>
    %138 = arith.maximumf %131, %137 : vector<16x128xf32>
    %c15_i32_55 = arith.constant 15 : i32
    %139 = tpu.dynamic_rotate %138 by %c15_i32_55 dim 0 : vector<16x128xf32>, i32 -> vector<16x128xf32>
    %140 = arith.maximumf %138, %139 : vector<16x128xf32>
    %141 = vector.extract_strided_slice %140 {offsets = [0, 0], sizes = [15, 128], strides = [1, 1]} : vector<16x128xf32> to vector<15x128xf32>
    %c1_56 = arith.constant 1 : index
    %c0_57 = arith.constant 0 : index
    %c0_58 = arith.constant 0 : index
    %142 = vector.load %arg4[%c1_56, %c0_57, %c0_58] : memref<2x15x128xf32, #tpu.memory_space<vmem>>, vector<1x15x128xf32>
    %143 = vector.shape_cast %142 : vector<1x15x128xf32> to vector<15x128xf32>
    %144 = vector.shape_cast %141 : vector<15x128xf32> to vector<1x15x128xf32>
    tpu.vector_store %arg4[%c1_56, %c0_57, %c0_58], %144 {strides = array<i32>} : memref<2x15x128xf32, #tpu.memory_space<vmem>>, vector<1x15x128xf32>,
    return
  }
  func.func @transform_0(%arg0: i32) -> (i32, i32, i32, i32) {
    %c0_i32 = arith.constant 0 : i32
    %c0_i32_0 = arith.constant 0 : i32
    %c0_i32_1 = arith.constant 0 : i32
    %c0_i32_2 = arith.constant 0 : i32
    %c0_i32_3 = arith.constant 0 : i32
    return %c0_i32, %c0_i32_0, %c0_i32_1, %c0_i32_2 : i32, i32, i32, i32
  }
  func.func @transform_1(%arg0: i32) -> (i32, i32, i32) {
    %c0_i32 = arith.constant 0 : i32
    %c0_i32_0 = arith.constant 0 : i32
    %c0_i32_1 = arith.constant 0 : i32
    %c0_i32_2 = arith.constant 0 : i32
    return %c0_i32, %c0_i32_0, %c0_i32_1 : i32, i32, i32
  }
  func.func @transform_2(%arg0: i32) -> (i32, i32) {
    %c0_i32 = arith.constant 0 : i32
    %c0_i32_0 = arith.constant 0 : i32
    %c0_i32_1 = arith.constant 0 : i32
    return %c0_i32, %c0_i32_0 : i32, i32
  }
  func.func @transform_3(%arg0: i32) -> (i32, i32, i32) {
    %c0_i32 = arith.constant 0 : i32
    %c0_i32_0 = arith.constant 0 : i32
    %c0_i32_1 = arith.constant 0 : i32
    %c0_i32_2 = arith.constant 0 : i32
    return %c0_i32, %c0_i32_0, %c0_i32_1 : i32, i32, i32
  }
}

</mosaic_0001>

<llo_original>
// kernel: cnn_with_pooling.1
$region0: #{cnn_with_pooling.1}
  #allocation0 [shape = 'u32[]', space=smem, size = 0x4, offset = 0x4, fixed_abs, tag = 'smem constant byte address 0x4 - core index']
  #allocation1 [shape = 'u32[72,128]{1,0:T(1,128)}', space=vmem, size = 0x9000, scoped, tag = 'internal scratch']
  %s0 = inlined_call_operand.vmem [shape: f32[4,2,18,128], index: 0, kind: input, shape index: {}]
  %s1 = inlined_call_operand.vmem [shape: f32[9,16,128], index: 1, kind: input, shape index: {}]
  %s2 = inlined_call_operand.vmem [shape: f32[16,128], index: 2, kind: input, shape index: {}]
  %s3 = inlined_call_operand.vmem [shape: f32[2,15,128], index: 3, kind: output, shape index: {}]
  %s4 = sld [smem:[#allocation0]]
  $region22: #{cnn_with_pooling.1} parent=0
    _
  %s6 = ssub.s32 1, %s4
  %s7 = scalar_select 0, %s6, %s4
  // Predicated region
  $region2: #{cnn_with_pooling.1} parent=0 // pred_check
    _
  $region3: #{cnn_with_pooling.1} parent=0 // pred_check_branch
    %9 = sbr.rel (0) target = $region5
  $region4: #{cnn_with_pooling.1} parent=0 // pred_region
    _
  $region5: #{cnn_with_pooling.1} parent=0 // pred_fallthru
    _
  // Predicated region
  $region6: #{cnn_with_pooling.1} parent=0 // pred_check
    _
  $region7: #{cnn_with_pooling.1} parent=0 // pred_check_branch
    %11 = sbr.rel (0) target = $region9
  $region8: #{cnn_with_pooling.1} parent=0 // pred_region
    _
  $region9: #{cnn_with_pooling.1} parent=0 // pred_fallthru
    _
  // Predicated region
  $region10: #{cnn_with_pooling.1} parent=0 // pred_check
    _
  $region11: #{cnn_with_pooling.1} parent=0 // pred_check_branch
    %13 = sbr.rel (0) target = $region13
  $region12: #{cnn_with_pooling.1} parent=0 // pred_region
    _
  $region13: #{cnn_with_pooling.1} parent=0 // pred_fallthru
    _
  %v14 = vld [vmem:[%s1] sm:$0xff]
  %v15 = vld [vmem:[%s1 + $0x8] sm:$0xff]
  %s16 = scalar_lea.vmem %s1, 16
  %v17 = vld [vmem:[%s16] sm:$0xff]
  %v18 = vld [vmem:[%s16 + $0x8] sm:$0xff]
  %s19 = scalar_lea.vmem %s1, 32
  %v20 = vld [vmem:[%s19] sm:$0xff]
  %v21 = vld [vmem:[%s19 + $0x8] sm:$0xff]
  %s22 = scalar_lea.vmem %s1, 48
  %v23 = vld [vmem:[%s22] sm:$0xff]
  %v24 = vld [vmem:[%s22 + $0x8] sm:$0xff]
  %s25 = scalar_lea.vmem %s1, 64
  %v26 = vld [vmem:[%s25] sm:$0xff]
  %v27 = vld [vmem:[%s25 + $0x8] sm:$0xff]
  %s28 = scalar_lea.vmem %s1, 80
  %v29 = vld [vmem:[%s28] sm:$0xff]
  %v30 = vld [vmem:[%s28 + $0x8] sm:$0xff]
  %s31 = scalar_lea.vmem %s1, 96
  %v32 = vld [vmem:[%s31] sm:$0xff]
  %v33 = vld [vmem:[%s31 + $0x8] sm:$0xff]
  %s34 = scalar_lea.vmem %s1, 112
  %v35 = vld [vmem:[%s34] sm:$0xff]
  %v36 = vld [vmem:[%s34 + $0x8] sm:$0xff]
  %s37 = scalar_lea.vmem %s1, 128
  %v38 = vld [vmem:[%s37] sm:$0xff]
  %v39 = vld [vmem:[%s37 + $0x8] sm:$0xff]
  %v40 = vld [vmem:[%s2] sm:$0xff]
  %v41 = vld [vmem:[%s2 + $0x8] sm:$0xff]
  %v42 = vld [vmem:[%s0] sm:$0xff]
  %v43 = vld [vmem:[%s0 + $0x8] sm:$0xff]
  %v44 = vld [vmem:[%s0 + $0x10] sm:$0x3]
  %s45 = scalar_lea.vmem %s0, 48
  %v46 = vld [vmem:[%s45] sm:$0xff]
  %v47 = vld [vmem:[%s45 + $0x8] sm:$0xff]
  %v48 = vld [vmem:[%s45 + $0x10] sm:$0x3]
  %s49 = scalar_lea.vmem %s0, 96
  %v50 = vld [vmem:[%s49] sm:$0xff]
  %v51 = vld [vmem:[%s49 + $0x8] sm:$0xff]
  %v52 = vld [vmem:[%s49 + $0x10] sm:$0x3]
  %s53 = scalar_lea.vmem %s0, 144
  %v54 = vld [vmem:[%s53] sm:$0xff]
  %v55 = vld [vmem:[%s53 + $0x8] sm:$0xff]
  %v56 = vld [vmem:[%s53 + $0x10] sm:$0x3]
  %v57 = vmul.f32 %v14, %v42
  %v58 = vmul.f32 %v15, %v43
  %v59 = vadd.f32 %v40, %v57
  %v60 = vadd.f32 %v41, %v58
  %v61 = vmul.f32 %v17, %v46
  %v62 = vmul.f32 %v18, %v47
  %v63 = vadd.f32 %v59, %v61
  %v64 = vadd.f32 %v60, %v62
  %v65 = vmul.f32 %v20, %v50
  %v66 = vmul.f32 %v21, %v51
  %v67 = vadd.f32 %v63, %v65
  %v68 = vadd.f32 %v64, %v66
  %v69 = vmul.f32 %v14, %v46
  %v70 = vmul.f32 %v15, %v47
  %v71 = vadd.f32 %v40, %v69
  %v72 = vadd.f32 %v41, %v70
  %v73 = vmul.f32 %v17, %v50
  %v74 = vmul.f32 %v18, %v51
  %v75 = vadd.f32 %v71, %v73
  %v76 = vadd.f32 %v72, %v74
  %v77 = vmul.f32 %v20, %v54
  %v78 = vmul.f32 %v21, %v55
  %v79 = vadd.f32 %v75, %v77
  %v80 = vadd.f32 %v76, %v78
  %vm84 = vcmask 1046528
  %v85 = vrot.slane %v42, 1
  %v86 = vrot.slane %v43, 1
  %v87 = vsel %vm84, %v85, %v86
  %v88 = vrot.slane %v44, 1
  %v89 = vsel %vm84, %v86, %v88
  %v92 = vmul.f32 %v23, %v87
  %v93 = vmul.f32 %v24, %v89
  %v94 = vadd.f32 %v67, %v92
  %v95 = vadd.f32 %v68, %v93
  %v99 = vrot.slane %v46, 1
  %v100 = vrot.slane %v47, 1
  %v101 = vsel %vm84, %v99, %v100
  %v102 = vrot.slane %v48, 1
  %v103 = vsel %vm84, %v100, %v102
  %v106 = vmul.f32 %v26, %v101
  %v107 = vmul.f32 %v27, %v103
  %v108 = vadd.f32 %v94, %v106
  %v109 = vadd.f32 %v95, %v107
  %v113 = vrot.slane %v50, 1
  %v114 = vrot.slane %v51, 1
  %v115 = vsel %vm84, %v113, %v114
  %v116 = vrot.slane %v52, 1
  %v117 = vsel %vm84, %v114, %v116
  %v120 = vmul.f32 %v29, %v115
  %v121 = vmul.f32 %v30, %v117
  %v122 = vadd.f32 %v108, %v120
  %v123 = vadd.f32 %v109, %v121
  %v124 = vmul.f32 %v23, %v101
  %v125 = vmul.f32 %v24, %v103
  %v126 = vadd.f32 %v79, %v124
  %v127 = vadd.f32 %v80, %v125
  %v128 = vmul.f32 %v26, %v115
  %v129 = vmul.f32 %v27, %v117
  %v130 = vadd.f32 %v126, %v128
  %v131 = vadd.f32 %v127, %v129
  %v135 = vrot.slane %v54, 1
  %v136 = vrot.slane %v55, 1
  %v137 = vsel %vm84, %v135, %v136
  %v138 = vrot.slane %v56, 1
  %v139 = vsel %vm84, %v136, %v138
  %v142 = vmul.f32 %v29, %v137
  %v143 = vmul.f32 %v30, %v139
  %v144 = vadd.f32 %v130, %v142
  %v145 = vadd.f32 %v131, %v143
  %vm146 = vcmask 1045504
  %v147 = vrot.slane %v42, 2
  %v148 = vrot.slane %v43, 2
  %v149 = vsel %vm146, %v147, %v148
  %v150 = vrot.slane %v44, 2
  %v151 = vsel %vm146, %v148, %v150
  %v154 = vmul.f32 %v32, %v149
  %v155 = vmul.f32 %v33, %v151
  %v156 = vadd.f32 %v122, %v154
  %v157 = vadd.f32 %v123, %v155
  %v158 = vrot.slane %v46, 2
  %v159 = vrot.slane %v47, 2
  %v160 = vsel %vm146, %v158, %v159
  %v161 = vrot.slane %v48, 2
  %v162 = vsel %vm146, %v159, %v161
  %v165 = vmul.f32 %v35, %v160
  %v166 = vmul.f32 %v36, %v162
  %v167 = vadd.f32 %v156, %v165
  %v168 = vadd.f32 %v157, %v166
  %v169 = vrot.slane %v50, 2
  %v170 = vrot.slane %v51, 2
  %v171 = vsel %vm146, %v169, %v170
  %v172 = vrot.slane %v52, 2
  %v173 = vsel %vm146, %v170, %v172
  %v176 = vmul.f32 %v38, %v171
  %v177 = vmul.f32 %v39, %v173
  %v178 = vadd.f32 %v167, %v176
  %v179 = vadd.f32 %v168, %v177
  %v180 = vmul.f32 %v32, %v160
  %v181 = vmul.f32 %v33, %v162
  %v182 = vadd.f32 %v144, %v180
  %v183 = vadd.f32 %v145, %v181
  %v184 = vmul.f32 %v35, %v171
  %v185 = vmul.f32 %v36, %v173
  %v186 = vadd.f32 %v182, %v184
  %v187 = vadd.f32 %v183, %v185
  %v188 = vrot.slane %v54, 2
  %v189 = vrot.slane %v55, 2
  %v190 = vsel %vm146, %v188, %v189
  %v191 = vrot.slane %v56, 2
  %v192 = vsel %vm146, %v189, %v191
  %v195 = vmul.f32 %v38, %v190
  %v196 = vmul.f32 %v39, %v192
  %v197 = vadd.f32 %v186, %v195
  %v198 = vadd.f32 %v187, %v196
  %v199 = vmax.f32 %v178, %v197
  %v200 = vmax.f32 %v179, %v198
  %v201 = vrot.slane %v199, 1
  %v202 = vrot.slane %v200, 1
  %v203 = vlaneseq
  %v204 = vshrl.u32 %v203, 7
  %vm205 = vcmp.lt.s32.totalorder %v204, 7
  %v206 = vsel %vm205, %v201, %v202
  %v207 = vsel %vm205, %v202, %v201
  %v208 = vmax.f32 %v199, %v206
  %v209 = vmax.f32 %v200, %v207
  %210 = vst [vmem:[%s3] sm:$0xff] %v208
  %211 = vst [vmem:[%s3 + $0x8] sm:$0x7f] %v209
  %s212 = scalar_lea.vmem %s0, 24
  %v213 = vld [vmem:[%s212] sm:$0xff]
  %v214 = vld [vmem:[%s212 + $0x8] sm:$0xff]
  %v215 = vld [vmem:[%s212 + $0x10] sm:$0x3]
  %s216 = scalar_lea.vmem %s0, 72
  %v217 = vld [vmem:[%s216] sm:$0xff]
  %v218 = vld [vmem:[%s216 + $0x8] sm:$0xff]
  %v219 = vld [vmem:[%s216 + $0x10] sm:$0x3]
  %s220 = scalar_lea.vmem %s0, 120
  %v221 = vld [vmem:[%s220] sm:$0xff]
  %v222 = vld [vmem:[%s220 + $0x8] sm:$0xff]
  %v223 = vld [vmem:[%s220 + $0x10] sm:$0x3]
  %s224 = scalar_lea.vmem %s0, 168
  %v225 = vld [vmem:[%s224] sm:$0xff]
  %v226 = vld [vmem:[%s224 + $0x8] sm:$0xff]
  %v227 = vld [vmem:[%s224 + $0x10] sm:$0x3]
  %v228 = vmul.f32 %v14, %v213
  %v229 = vmul.f32 %v15, %v214
  %v230 = vadd.f32 %v40, %v228
  %v231 = vadd.f32 %v41, %v229
  %v232 = vmul.f32 %v17, %v217
  %v233 = vmul.f32 %v18, %v218
  %v234 = vadd.f32 %v230, %v232
  %v235 = vadd.f32 %v231, %v233
  %v236 = vmul.f32 %v20, %v221
  %v237 = vmul.f32 %v21, %v222
  %v238 = vadd.f32 %v234, %v236
  %v239 = vadd.f32 %v235, %v237
  %v240 = vmul.f32 %v14, %v217
  %v241 = vmul.f32 %v15, %v218
  %v242 = vadd.f32 %v40, %v240
  %v243 = vadd.f32 %v41, %v241
  %v244 = vmul.f32 %v17, %v221
  %v245 = vmul.f32 %v18, %v222
  %v246 = vadd.f32 %v242, %v244
  %v247 = vadd.f32 %v243, %v245
  %v248 = vmul.f32 %v20, %v225
  %v249 = vmul.f32 %v21, %v226
  %v250 = vadd.f32 %v246, %v248
  %v251 = vadd.f32 %v247, %v249
  %v255 = vrot.slane %v213, 1
  %v256 = vrot.slane %v214, 1
  %v257 = vsel %vm84, %v255, %v256
  %v258 = vrot.slane %v215, 1
  %v259 = vsel %vm84, %v256, %v258
  %v262 = vmul.f32 %v23, %v257
  %v263 = vmul.f32 %v24, %v259
  %v264 = vadd.f32 %v238, %v262
  %v265 = vadd.f32 %v239, %v263
  %v269 = vrot.slane %v217, 1
  %v270 = vrot.slane %v218, 1
  %v271 = vsel %vm84, %v269, %v270
  %v272 = vrot.slane %v219, 1
  %v273 = vsel %vm84, %v270, %v272
  %v276 = vmul.f32 %v26, %v271
  %v277 = vmul.f32 %v27, %v273
  %v278 = vadd.f32 %v264, %v276
  %v279 = vadd.f32 %v265, %v277
  %v283 = vrot.slane %v221, 1
  %v284 = vrot.slane %v222, 1
  %v285 = vsel %vm84, %v283, %v284
  %v286 = vrot.slane %v223, 1
  %v287 = vsel %vm84, %v284, %v286
  %v290 = vmul.f32 %v29, %v285
  %v291 = vmul.f32 %v30, %v287
  %v292 = vadd.f32 %v278, %v290
  %v293 = vadd.f32 %v279, %v291
  %v294 = vmul.f32 %v23, %v271
  %v295 = vmul.f32 %v24, %v273
  %v296 = vadd.f32 %v250, %v294
  %v297 = vadd.f32 %v251, %v295
  %v298 = vmul.f32 %v26, %v285
  %v299 = vmul.f32 %v27, %v287
  %v300 = vadd.f32 %v296, %v298
  %v301 = vadd.f32 %v297, %v299
  %v305 = vrot.slane %v225, 1
  %v306 = vrot.slane %v226, 1
  %v307 = vsel %vm84, %v305, %v306
  %v308 = vrot.slane %v227, 1
  %v309 = vsel %vm84, %v306, %v308
  %v312 = vmul.f32 %v29, %v307
  %v313 = vmul.f32 %v30, %v309
  %v314 = vadd.f32 %v300, %v312
  %v315 = vadd.f32 %v301, %v313
  %v316 = vrot.slane %v213, 2
  %v317 = vrot.slane %v214, 2
  %v318 = vsel %vm146, %v316, %v317
  %v319 = vrot.slane %v215, 2
  %v320 = vsel %vm146, %v317, %v319
  %v323 = vmul.f32 %v32, %v318
  %v324 = vmul.f32 %v33, %v320
  %v325 = vadd.f32 %v292, %v323
  %v326 = vadd.f32 %v293, %v324
  %v327 = vrot.slane %v217, 2
  %v328 = vrot.slane %v218, 2
  %v329 = vsel %vm146, %v327, %v328
  %v330 = vrot.slane %v219, 2
  %v331 = vsel %vm146, %v328, %v330
  %v334 = vmul.f32 %v35, %v329
  %v335 = vmul.f32 %v36, %v331
  %v336 = vadd.f32 %v325, %v334
  %v337 = vadd.f32 %v326, %v335
  %v338 = vrot.slane %v221, 2
  %v339 = vrot.slane %v222, 2
  %v340 = vsel %vm146, %v338, %v339
  %v341 = vrot.slane %v223, 2
  %v342 = vsel %vm146, %v339, %v341
  %v345 = vmul.f32 %v38, %v340
  %v346 = vmul.f32 %v39, %v342
  %v347 = vadd.f32 %v336, %v345
  %v348 = vadd.f32 %v337, %v346
  %v349 = vmul.f32 %v32, %v329
  %v350 = vmul.f32 %v33, %v331
  %v351 = vadd.f32 %v314, %v349
  %v352 = vadd.f32 %v315, %v350
  %v353 = vmul.f32 %v35, %v340
  %v354 = vmul.f32 %v36, %v342
  %v355 = vadd.f32 %v351, %v353
  %v356 = vadd.f32 %v352, %v354
  %v357 = vrot.slane %v225, 2
  %v358 = vrot.slane %v226, 2
  %v359 = vsel %vm146, %v357, %v358
  %v360 = vrot.slane %v227, 2
  %v361 = vsel %vm146, %v358, %v360
  %v364 = vmul.f32 %v38, %v359
  %v365 = vmul.f32 %v39, %v361
  %v366 = vadd.f32 %v355, %v364
  %v367 = vadd.f32 %v356, %v365
  %v368 = vmax.f32 %v347, %v366
  %v369 = vmax.f32 %v348, %v367
  %v370 = vrot.slane %v368, 1
  %v371 = vrot.slane %v369, 1
  %v372 = vsel %vm205, %v370, %v371
  %v373 = vsel %vm205, %v371, %v370
  %v374 = vmax.f32 %v368, %v372
  %v375 = vmax.f32 %v369, %v373
  %s376 = scalar_lea.vmem %s3, 16
  %377 = vst [vmem:[%s376] sm:$0xff] %v374
  %378 = vst [vmem:[%s376 + $0x8] sm:$0x7f] %v375
  // Predicated region
  $region14: #{cnn_with_pooling.1} parent=0 // pred_check
    _
  $region15: #{cnn_with_pooling.1} parent=0 // pred_check_branch
    %380 = sbr.rel (0) target = $region17
  $region16: #{cnn_with_pooling.1} parent=0 // pred_region
    _
  $region17: #{cnn_with_pooling.1} parent=0 // pred_fallthru
    _
  // Predicated region
  $region18: #{cnn_with_pooling.1} parent=0 // pred_check
    _
  $region19: #{cnn_with_pooling.1} parent=0 // pred_check_branch
    %382 = sbr.rel (0) target = $region21
  $region20: #{cnn_with_pooling.1} parent=0 // pred_region
    _
  $region21: #{cnn_with_pooling.1} parent=0 // pred_fallthru
    _

</llo_original>
